<compile_context>
chip_gen: v5e
topology: v5e:2x2
jax: 0.10.0
libtpu: 0.0.40
codegen_flags: <defaults>
</compile_context>

<pallas_src>
import functools

import jax
import jax.numpy as jnp
from jax import lax
from jax.experimental import pallas as pl
from jax.experimental.pallas import tpu as pltpu

LANES = 128


def _round_up(n, m):
    return ((n + m - 1) // m) * m


# ---------------------------------------------------------------------------
# Kernel
# ---------------------------------------------------------------------------
def qnetwork_kernel(x_ref, w_ref, b_ref, o_ref, *, action_size):
    """x_ref: (TB, 128)  w_ref: (3, 128, 128)  b_ref: (8, 128)  o_ref: (TB, 128)."""
    x = x_ref[...]                                                      # (TB, 128)

    # fc1 + relu  (padded weight rows/cols are zero, so padding stays zero)
    h1 = jnp.dot(x, w_ref[0], preferred_element_type=jnp.float32) + b_ref[0:1, :]
    h1 = jnp.maximum(h1, 0.0)

    # fc2 + relu
    h2 = jnp.dot(h1, w_ref[1], preferred_element_type=jnp.float32) + b_ref[1:2, :]
    h2 = jnp.maximum(h2, 0.0)

    # fused heads: columns [0:A] = advantage, column A = value, rest = 0
    y = jnp.dot(h2, w_ref[2], preferred_element_type=jnp.float32) + b_ref[2:3, :]

    col = lax.broadcasted_iota(jnp.int32, y.shape, 1)
    adv = jnp.where(col < action_size, y, 0.0)                          # (TB, 128)
    val = jnp.sum(jnp.where(col == action_size, y, 0.0),
                  axis=1, keepdims=True)                                # (TB, 1)
    adv_mean = jnp.sum(adv, axis=1, keepdims=True) * (1.0 / action_size)

    # dueling combine; columns >= A hold junk and are sliced off in the wrapper
    o_ref[...] = adv + val - adv_mean


# ---------------------------------------------------------------------------
# Parameter packing (one-time, plain JAX)
# ---------------------------------------------------------------------------
def pack_params(p):
    """Pack fc1 / fc2 / fused (adv|val) head into (3,128,128) + (8,128) f32."""
    def pad_w(w):
        out = jnp.zeros((LANES, LANES), jnp.float32)
        return out.at[: w.shape[0], : w.shape[1]].set(w)

    def pad_b(b):                           # b is (1, F)
        out = jnp.zeros((LANES,), jnp.float32)
        return out.at[: b.shape[1]].set(b[0])

    w3 = jnp.concatenate([p["wa"], p["wv"]], axis=1)      # (H2, A+1)
    b3 = jnp.concatenate([p["ba"], p["bv"]], axis=1)      # (1, A+1)

    w_packed = jnp.stack([pad_w(p["w1"]), pad_w(p["w2"]), pad_w(w3)])  # (3,128,128)
    b_packed = (jnp.zeros((8, LANES), jnp.float32)
                .at[0].set(pad_b(p["b1"]))
                .at[1].set(pad_b(p["b2"]))
                .at[2].set(pad_b(b3)))                                 # (8,128)
    return w_packed, b_packed


# ---------------------------------------------------------------------------
# Wrapper
# ---------------------------------------------------------------------------
def qnetwork_forward(state, params, *, block_b=256):
    """state: (B, state_size) f32. params: dict (see init_params)."""
    B, S = state.shape
    A = params["wa"].shape[1]

    w_packed, b_packed = pack_params(params)

    # batch tile: big tiles for large B, 8-row minimum otherwise
    TB = block_b if B >= block_b else _round_up(B, 8)
    B_pad = _round_up(B, TB)

    # lane-dense, zero-padded input (extra rows/cols multiply zero weight rows)
    x = jnp.zeros((B_pad, LANES), jnp.float32).at[:B, :S].set(state)

    out = pl.pallas_call(
        functools.partial(qnetwork_kernel, action_size=A),
        out_shape=jax.ShapeDtypeStruct((B_pad, LANES), jnp.float32),
        grid=(B_pad // TB,),
        in_specs=[
            pl.BlockSpec((TB, LANES), lambda i: (i, 0)),          # state tile
            pl.BlockSpec((3, LANES, LANES), lambda i: (0, 0, 0)),  # weights (resident)
            pl.BlockSpec((8, LANES), lambda i: (0, 0)),            # biases  (resident)
        ],
        out_specs=pl.BlockSpec((TB, LANES), lambda i: (i, 0)),
        compiler_params=pltpu.CompilerParams(
            dimension_semantics=("parallel",)),
    )(x, w_packed, b_packed)

    return out[:B, :A]


# ---------------------------------------------------------------------------
# Init + pure-JAX reference
# ---------------------------------------------------------------------------
def init_params(key, state_size, action_size, h1=50, h2=50):
    """PyTorch nn.Linear-style init: U(-1/sqrt(fan_in), 1/sqrt(fan_in))."""
    def linear(k, fan_in, fan_out):
        kw, kb = jax.random.split(k)
        bound = 1.0 / jnp.sqrt(jnp.float32(fan_in))
        w = jax.random.uniform(kw, (fan_in, fan_out), jnp.float32, -bound, bound)
        b = jax.random.uniform(kb, (1, fan_out), jnp.float32, -bound, bound)
        return w, b

    k1, k2, k3, k4 = jax.random.split(key, 4)
    w1, b1 = linear(k1, state_size, h1)
    w2, b2 = linear(k2, h1, h2)
    wa, ba = linear(k3, h2, action_size)
    wv, bv = linear(k4, h2, 1)
    return dict(w1=w1, b1=b1, w2=w2, b2=b2, wa=wa, ba=ba, wv=wv, bv=bv)


def qnetwork_reference(state, p):
    x = jnp.maximum(state @ p["w1"] + p["b1"], 0.0)
    x = jnp.maximum(x @ p["w2"] + p["b2"], 0.0)
    adv = x @ p["wa"] + p["ba"]
    val = x @ p["wv"] + p["bv"]
    return adv + val - jnp.mean(adv, axis=1, keepdims=True)


# ---------------------------------------------------------------------------
if __name__ == "__main__":
    key = jax.random.PRNGKey(0)
    k_params, k_state, k_state2 = jax.random.split(key, 3)

    state_size = 8
    action_size = 4
    batch = 2

    params = init_params(k_params, state_size, action_size)

    # small-shape check (module's nominal usage)
    state = jax.random.normal(k_state, (batch, state_size), jnp.float32)
    out = jax.block_until_ready(qnetwork_forward(state, params))
    ref = qnetwork_reference(state, params)
    assert out.shape == (batch, action_size)
    assert jnp.allclose(out, ref, atol=1e-5, rtol=1e-5), "mismatch vs reference (B=2)"

    # multi-step-grid check (exercises batch tiling + resident weights)
    state_big = jax.random.normal(k_state2, (64, state_size), jnp.float32)
    out_big = jax.block_until_ready(qnetwork_forward(state_big, params, block_b=16))
    ref_big = qnetwork_reference(state_big, params)
    assert out_big.shape == (64, action_size)
    assert jnp.allclose(out_big, ref_big, atol=1e-5, rtol=1e-5), "mismatch vs reference (B=64)"

    print("KERNEL_OK")
</pallas_src>

<mosaic_0001>
module attributes {stable_mosaic.version = 11 : i64} {
  func.func @qnetwork_kernel(%arg0: i32, %arg1: memref<8x128xf32, #tpu.memory_space<vmem>>, %arg2: memref<3x128x128xf32, #tpu.memory_space<vmem>>, %arg3: memref<8x128xf32, #tpu.memory_space<vmem>>, %arg4: memref<8x128xf32, #tpu.memory_space<vmem>>) attributes {dimension_semantics = [#tpu.dimension_semantics<parallel>], iteration_bounds = array<i64: 1>, scalar_prefetch = 0 : i64, scratch_operands = 0 : i64, tpu.core_type = #tpu.core_type<tc>, window_params = [{transform_indices = @transform_0, window_bounds = array<i64: 8, 128>}, {pipeline_mode = #tpu.pipeline_mode<synchronous>, transform_indices = @transform_1, window_bounds = array<i64: 3, 128, 128>}, {pipeline_mode = #tpu.pipeline_mode<synchronous>, transform_indices = @transform_2, window_bounds = array<i64: 8, 128>}, {transform_indices = @transform_3, window_bounds = array<i64: 8, 128>}]} {
    %c0 = arith.constant 0 : index
    %c0_0 = arith.constant 0 : index
    %0 = vector.load %arg1[%c0, %c0_0] : memref<8x128xf32, #tpu.memory_space<vmem>>, vector<8x128xf32>
    %c0_1 = arith.constant 0 : index
    %c0_2 = arith.constant 0 : index
    %c0_3 = arith.constant 0 : index
    %1 = vector.load %arg2[%c0_1, %c0_2, %c0_3] : memref<3x128x128xf32, #tpu.memory_space<vmem>>, vector<1x128x128xf32>
    %2 = vector.shape_cast %1 : vector<1x128x128xf32> to vector<128x128xf32>
    %cst = arith.constant dense<0.000000e+00> : vector<8x128xf32>
    %3 = tpu.matmul %0, %2, %cst {dimension_numbers = #tpu.dot_dimension_numbers<[1], [0], [0], [1], [0, 0, 1, 1], [], []>} : vector<8x128xf32>, vector<128x128xf32>, vector<8x128xf32> -> vector<8x128xf32>
    %c0_4 = arith.constant 0 : index
    %c0_5 = arith.constant 0 : index
    %4 = vector.load %arg3[%c0_4, %c0_5] : memref<8x128xf32, #tpu.memory_space<vmem>>, vector<1x128xf32>
    %5 = vector.broadcast %4 : vector<1x128xf32> to vector<8x128xf32>
    %6 = arith.addf %3, %5 : vector<8x128xf32>
    %cst_6 = arith.constant 0.000000e+00 : f32
    %7 = vector.broadcast %cst_6 : f32 to vector<8x128xf32>
    %8 = arith.maximumf %6, %7 : vector<8x128xf32>
    %c1 = arith.constant 1 : index
    %c0_7 = arith.constant 0 : index
    %c0_8 = arith.constant 0 : index
    %9 = vector.load %arg2[%c1, %c0_7, %c0_8] : memref<3x128x128xf32, #tpu.memory_space<vmem>>, vector<1x128x128xf32>
    %10 = vector.shape_cast %9 : vector<1x128x128xf32> to vector<128x128xf32>
    %cst_9 = arith.constant dense<0.000000e+00> : vector<8x128xf32>
    %11 = tpu.matmul %8, %10, %cst_9 {dimension_numbers = #tpu.dot_dimension_numbers<[1], [0], [0], [1], [0, 0, 1, 1], [], []>} : vector<8x128xf32>, vector<128x128xf32>, vector<8x128xf32> -> vector<8x128xf32>
    %c1_10 = arith.constant 1 : index
    %c0_11 = arith.constant 0 : index
    %12 = vector.load %arg3[%c1_10, %c0_11] : memref<8x128xf32, #tpu.memory_space<vmem>>, vector<1x128xf32>
    %13 = vector.broadcast %12 : vector<1x128xf32> to vector<8x128xf32>
    %14 = arith.addf %11, %13 : vector<8x128xf32>
    %cst_12 = arith.constant 0.000000e+00 : f32
    %15 = vector.broadcast %cst_12 : f32 to vector<8x128xf32>
    %16 = arith.maximumf %14, %15 : vector<8x128xf32>
    %c2 = arith.constant 2 : index
    %c0_13 = arith.constant 0 : index
    %c0_14 = arith.constant 0 : index
    %17 = vector.load %arg2[%c2, %c0_13, %c0_14] : memref<3x128x128xf32, #tpu.memory_space<vmem>>, vector<1x128x128xf32>
    %18 = vector.shape_cast %17 : vector<1x128x128xf32> to vector<128x128xf32>
    %cst_15 = arith.constant dense<0.000000e+00> : vector<8x128xf32>
    %19 = tpu.matmul %16, %18, %cst_15 {dimension_numbers = #tpu.dot_dimension_numbers<[1], [0], [0], [1], [0, 0, 1, 1], [], []>} : vector<8x128xf32>, vector<128x128xf32>, vector<8x128xf32> -> vector<8x128xf32>
    %c2_16 = arith.constant 2 : index
    %c0_17 = arith.constant 0 : index
    %20 = vector.load %arg3[%c2_16, %c0_17] : memref<8x128xf32, #tpu.memory_space<vmem>>, vector<1x128xf32>
    %21 = vector.broadcast %20 : vector<1x128xf32> to vector<8x128xf32>
    %22 = arith.addf %19, %21 : vector<8x128xf32>
    %23 = tpu.iota {dimensions = array<i32: 1>} : vector<8x128xi32>
    %c4_i32 = arith.constant 4 : i32
    %24 = vector.broadcast %c4_i32 : i32 to vector<8x128xi32>
    %25 = arith.cmpi slt, %23, %24 : vector<8x128xi32>
    %cst_18 = arith.constant 0.000000e+00 : f32
    %26 = vector.broadcast %cst_18 : f32 to vector<8x128xf32>
    %27 = arith.select %25, %22, %26 : vector<8x128xi1>, vector<8x128xf32>
    %c4_i32_19 = arith.constant 4 : i32
    %28 = vector.broadcast %c4_i32_19 : i32 to vector<8x128xi32>
    %29 = arith.cmpi eq, %23, %28 : vector<8x128xi32>
    %cst_20 = arith.constant 0.000000e+00 : f32
    %30 = vector.broadcast %cst_20 : f32 to vector<8x128xf32>
    %31 = arith.select %29, %22, %30 : vector<8x128xi1>, vector<8x128xf32>
    %cst_21 = arith.constant dense<0.000000e+00> : vector<8xf32>
    %32 = vector.multi_reduction <add>, %31, %cst_21 [1] : vector<8x128xf32> to vector<8xf32>
    %33 = vector.shape_cast %32 : vector<8xf32> to vector<8x1xf32>
    %cst_22 = arith.constant dense<0.000000e+00> : vector<8xf32>
    %34 = vector.multi_reduction <add>, %27, %cst_22 [1] : vector<8x128xf32> to vector<8xf32>
    %35 = vector.shape_cast %34 : vector<8xf32> to vector<8x1xf32>
    %cst_23 = arith.constant 2.500000e-01 : f32
    %36 = vector.broadcast %cst_23 : f32 to vector<8x1xf32>
    %37 = arith.mulf %35, %36 : vector<8x1xf32>
    %38 = vector.broadcast %33 : vector<8x1xf32> to vector<8x128xf32>
    %39 = arith.addf %27, %38 : vector<8x128xf32>
    %40 = vector.broadcast %37 : vector<8x1xf32> to vector<8x128xf32>
    %41 = arith.subf %39, %40 : vector<8x128xf32>
    %c0_24 = arith.constant 0 : index
    %c0_25 = arith.constant 0 : index
    %42 = vector.load %arg4[%c0_24, %c0_25] : memref<8x128xf32, #tpu.memory_space<vmem>>, vector<8x128xf32>
    tpu.vector_store %arg4[%c0_24, %c0_25], %41 {strides = array<i32>} : memref<8x128xf32, #tpu.memory_space<vmem>>, vector<8x128xf32>,
    return
  }
  func.func @transform_0(%arg0: i32) -> (i32, i32) {
    %c0_i32 = arith.constant 0 : i32
    %c0_i32_0 = arith.constant 0 : i32
    return %arg0, %c0_i32 : i32, i32
  }
  func.func @transform_1(%arg0: i32) -> (i32, i32, i32) {
    %c0_i32 = arith.constant 0 : i32
    %c0_i32_0 = arith.constant 0 : i32
    %c0_i32_1 = arith.constant 0 : i32
    %c0_i32_2 = arith.constant 0 : i32
    return %c0_i32, %c0_i32_0, %c0_i32_1 : i32, i32, i32
  }
  func.func @transform_2(%arg0: i32) -> (i32, i32) {
    %c0_i32 = arith.constant 0 : i32
    %c0_i32_0 = arith.constant 0 : i32
    %c0_i32_1 = arith.constant 0 : i32
    return %c0_i32, %c0_i32_0 : i32, i32
  }
  func.func @transform_3(%arg0: i32) -> (i32, i32) {
    %c0_i32 = arith.constant 0 : i32
    %c0_i32_0 = arith.constant 0 : i32
    return %arg0, %c0_i32 : i32, i32
  }
}

</mosaic_0001>

<llo_original>
// kernel: tpu_custom_call.1
$region0: #{tpu_custom_call.1}
  #allocation0 [shape = 'u32[]', space=smem, size = 0x4, offset = 0x4, fixed_abs, tag = 'smem constant byte address 0x4 - core index']
  #allocation1 [shape = 'u32[72,128]{1,0:T(1,128)}', space=vmem, size = 0x9000, scoped, tag = 'internal scratch']
  %s0 = inlined_call_operand.hbm [shape: f32[8,128], index: 0, kind: input, shape index: {}]
  %s1 = inlined_call_operand.hbm [shape: f32[3,128,128], index: 1, kind: input, shape index: {}]
  %s2 = inlined_call_operand.hbm [shape: f32[8,128], index: 2, kind: input, shape index: {}]
  %s3 = inlined_call_operand.hbm [shape: f32[8,128], index: 3, kind: output, shape index: {}]
  %s4 = sld [smem:[#allocation0]]
  $region34: #{tpu_custom_call.1} parent=0
    _
  %s6 = ssub.s32 1, %s4
  %s7 = scalar_select 0, %s6, %s4
  $region1: #{tpu_custom_call.1} parent=0
    #allocation2 [shape = 'u8[4096]{0}', space=vmem, size = 0x1000, scoped, tag = 'input window, operand 0, single buffered']
    #allocation3 [shape = 's32[1]{0}', space=sflag, size = 0x4, scoped, tag = 'scoped memory for tpu_custom_call.1']
    #allocation4 [shape = 's32[1]{0}', space=sflag, size = 0x4, scoped, tag = 'scoped memory for tpu_custom_call.1']
    #allocation5 [shape = 'u8[196608]{0}', space=vmem, size = 0x30000, scoped, tag = 'input window, operand 1, single buffered']
    #allocation6 [shape = 's32[1]{0}', space=sflag, size = 0x4, scoped, tag = 'scoped memory for tpu_custom_call.1']
    #allocation7 [shape = 'u8[4096]{0}', space=vmem, size = 0x1000, scoped, tag = 'input window, operand 2, single buffered']
    #allocation8 [shape = 'u8[4096]{0}', space=vmem, size = 0x1000, scoped, tag = 'output window, operand 0, single buffered']
    %8 = vsyncpa [#allocation3], 0
    %9 = vsyncpa [#allocation6], 0
    %10 = vsyncpa [#allocation4], 0
    // Predicated region
    $region2: #{tpu_custom_call.1} parent=1 // pred_check
      _
    $region3: #{tpu_custom_call.1} parent=1 // pred_check_branch
      %12 = sbr.rel (0) target = $region5
    $region4: #{tpu_custom_call.1} parent=1 // pred_region
      %14 = vsyncadd [#allocation3], 0
      %s16 = sshll.u32 %s0, 4
      %s17 = int_to_ptr.hbm [resolvable:$true] %s16
      %s18 = sshll.u32 [#allocation2], 4
      %s19 = int_to_ptr.vmem [resolvable:$true] %s18
      %21 = dma.hbm_to_vmem [thread:$0]  %s17, 128, %s19, [#allocation3]
    $region5: #{tpu_custom_call.1} parent=1 // pred_fallthru
      _
    // Predicated region
    $region6: #{tpu_custom_call.1} parent=1 // pred_check
      _
    $region7: #{tpu_custom_call.1} parent=1 // pred_check_branch
      %23 = sbr.rel (0) target = $region9
    $region8: #{tpu_custom_call.1} parent=1 // pred_region
      %25 = vsyncadd [#allocation6], 0
      %s26 = sshll.u32 %s1, 4
      %s27 = int_to_ptr.hbm [resolvable:$true] %s26
      %s28 = sshll.u32 [#allocation5], 4
      %s29 = int_to_ptr.vmem [resolvable:$true] %s28
      %34 = dma.hbm_to_vmem [thread:$0]  %s27, 6144, %s29, [#allocation6], 128, 128, 8
    $region9: #{tpu_custom_call.1} parent=1 // pred_fallthru
      _
    // Predicated region
    $region10: #{tpu_custom_call.1} parent=1 // pred_check
      _
    $region11: #{tpu_custom_call.1} parent=1 // pred_check_branch
      %36 = sbr.rel (0) target = $region13
    $region12: #{tpu_custom_call.1} parent=1 // pred_region
      %38 = vsyncadd [#allocation6], 0
      %s40 = sshll.u32 %s2, 4
      %s41 = int_to_ptr.hbm [resolvable:$true] %s40
      %s42 = sshll.u32 [#allocation7], 4
      %s43 = int_to_ptr.vmem [resolvable:$true] %s42
      %45 = dma.hbm_to_vmem [thread:$0]  %s41, 128, %s43, [#allocation6]
    $region13: #{tpu_custom_call.1} parent=1 // pred_fallthru
      _
    // Predicated region
    $region14: #{tpu_custom_call.1} parent=1 // pred_check
      _
    $region15: #{tpu_custom_call.1} parent=1 // pred_check_branch
      %47 = sbr.rel (0) target = $region17
    $region16: #{tpu_custom_call.1} parent=1 // pred_region
      %49 = dma.done [#allocation3], 128
    $region17: #{tpu_custom_call.1} parent=1 // pred_fallthru
      _
    // Predicated region
    $region18: #{tpu_custom_call.1} parent=1 // pred_check
      _
    $region19: #{tpu_custom_call.1} parent=1 // pred_check_branch
      %51 = sbr.rel (0) target = $region21
    $region20: #{tpu_custom_call.1} parent=1 // pred_region
      %53 = dma.done [#allocation6], 6144
    $region21: #{tpu_custom_call.1} parent=1 // pred_fallthru
      _
    // Predicated region
    $region22: #{tpu_custom_call.1} parent=1 // pred_check
      _
    $region23: #{tpu_custom_call.1} parent=1 // pred_check_branch
      %55 = sbr.rel (0) target = $region25
    $region24: #{tpu_custom_call.1} parent=1 // pred_region
      %57 = dma.done [#allocation6], 128
    $region25: #{tpu_custom_call.1} parent=1 // pred_fallthru
      _
    %v58 = vld [vmem:[#allocation2] sm:$0xff]
    %v59 = vld [vmem:[#allocation5] sm:$0xff]
    %v60 = vld [vmem:[#allocation5 + $0x8] sm:$0xff]
    %v61 = vld [vmem:[#allocation5 + $0x10] sm:$0xff]
    %v62 = vld [vmem:[#allocation5 + $0x18] sm:$0xff]
    %v63 = vld [vmem:[#allocation5 + $0x20] sm:$0xff]
    %v64 = vld [vmem:[#allocation5 + $0x28] sm:$0xff]
    %v65 = vld [vmem:[#allocation5 + $0x30] sm:$0xff]
    %v66 = vld [vmem:[#allocation5 + $0x38] sm:$0xff]
    %v67 = vld [vmem:[#allocation5 + $0x40] sm:$0xff]
    %v68 = vld [vmem:[#allocation5 + $0x48] sm:$0xff]
    %v69 = vld [vmem:[#allocation5 + $0x50] sm:$0xff]
    %v70 = vld [vmem:[#allocation5 + $0x58] sm:$0xff]
    %v71 = vld [vmem:[#allocation5 + $0x60] sm:$0xff]
    %v72 = vld [vmem:[#allocation5 + $0x68] sm:$0xff]
    %v73 = vld [vmem:[#allocation5 + $0x70] sm:$0xff]
    %v74 = vld [vmem:[#allocation5 + $0x78] sm:$0xff]
    %v75 = vld [vmem:[#allocation7] sm:$0x1]
    %v76 = vperm.slane %v75, 0
    %77 = vmatpush.msra.mxu0 %v74
    %78 = vmatpush.msra.mxu0 %v73
    %79 = vmatpush.msra.mxu0 %v72
    %80 = vmatpush.msra.mxu0 %v71
    %81 = vmatpush.msra.mxu0 %v70
    %82 = vmatpush.msra.mxu0 %v69
    %83 = vmatpush.msra.mxu0 %v68
    %84 = vmatpush.msra.mxu0 %v67
    %85 = vmatpush.msra.mxu0 %v66
    %86 = vmatpush.msra.mxu0 %v65
    %87 = vmatpush.msra.mxu0 %v64
    %88 = vmatpush.msra.mxu0 %v63
    %89 = vmatpush.msra.mxu0 %v62
    %90 = vmatpush.msra.mxu0 %v61
    %91 = vmatpush.msra.mxu0 %v60
    %92 = vmatpush.msra.mxu0 %v59
    %93 = vmatmul.f32.gmra.mxu0 %v58
    %v94 = vpop.f32.mrf.mxu0
    %v95 = vadd.f32 %v76, %v94
    %96 = vdwg.mxu0
    %v97 = vmax.f32 %v95, 0.0
    %s98 = scalar_lea.vmem [#allocation5], 128
    %v99 = vld [vmem:[%s98] sm:$0xff]
    %v100 = vld [vmem:[%s98 + $0x8] sm:$0xff]
    %v101 = vld [vmem:[%s98 + $0x10] sm:$0xff]
    %v102 = vld [vmem:[%s98 + $0x18] sm:$0xff]
    %v103 = vld [vmem:[%s98 + $0x20] sm:$0xff]
    %v104 = vld [vmem:[%s98 + $0x28] sm:$0xff]
    %v105 = vld [vmem:[%s98 + $0x30] sm:$0xff]
    %v106 = vld [vmem:[%s98 + $0x38] sm:$0xff]
    %v107 = vld [vmem:[%s98 + $0x40] sm:$0xff]
    %v108 = vld [vmem:[%s98 + $0x48] sm:$0xff]
    %v109 = vld [vmem:[%s98 + $0x50] sm:$0xff]
    %v110 = vld [vmem:[%s98 + $0x58] sm:$0xff]
    %v111 = vld [vmem:[%s98 + $0x60] sm:$0xff]
    %v112 = vld [vmem:[%s98 + $0x68] sm:$0xff]
    %v113 = vld [vmem:[%s98 + $0x70] sm:$0xff]
    %v114 = vld [vmem:[%s98 + $0x78] sm:$0xff]
    %v115 = vld [vmem:[#allocation7 + $0x1] sm:$0x1]
    %v116 = vperm.slane %v115, 0
    %117 = vmatpush.msra.mxu0 %v114
    %118 = vmatpush.msra.mxu0 %v113
    %119 = vmatpush.msra.mxu0 %v112
    %120 = vmatpush.msra.mxu0 %v111
    %121 = vmatpush.msra.mxu0 %v110
    %122 = vmatpush.msra.mxu0 %v109
    %123 = vmatpush.msra.mxu0 %v108
    %124 = vmatpush.msra.mxu0 %v107
    %125 = vmatpush.msra.mxu0 %v106
    %126 = vmatpush.msra.mxu0 %v105
    %127 = vmatpush.msra.mxu0 %v104
    %128 = vmatpush.msra.mxu0 %v103
    %129 = vmatpush.msra.mxu0 %v102
    %130 = vmatpush.msra.mxu0 %v101
    %131 = vmatpush.msra.mxu0 %v100
    %132 = vmatpush.msra.mxu0 %v99
    %133 = vmatmul.f32.gmra.mxu0 %v97
    %v134 = vpop.f32.mrf.mxu0
    %v135 = vadd.f32 %v116, %v134
    %136 = vdwg.mxu0
    %v137 = vmax.f32 %v135, 0.0
    %s138 = scalar_lea.vmem [#allocation5], 256
    %v139 = vld [vmem:[%s138] sm:$0xff]
    %v140 = vld [vmem:[%s138 + $0x8] sm:$0xff]
    %v141 = vld [vmem:[%s138 + $0x10] sm:$0xff]
    %v142 = vld [vmem:[%s138 + $0x18] sm:$0xff]
    %v143 = vld [vmem:[%s138 + $0x20] sm:$0xff]
    %v144 = vld [vmem:[%s138 + $0x28] sm:$0xff]
    %v145 = vld [vmem:[%s138 + $0x30] sm:$0xff]
    %v146 = vld [vmem:[%s138 + $0x38] sm:$0xff]
    %v147 = vld [vmem:[%s138 + $0x40] sm:$0xff]
    %v148 = vld [vmem:[%s138 + $0x48] sm:$0xff]
    %v149 = vld [vmem:[%s138 + $0x50] sm:$0xff]
    %v150 = vld [vmem:[%s138 + $0x58] sm:$0xff]
    %v151 = vld [vmem:[%s138 + $0x60] sm:$0xff]
    %v152 = vld [vmem:[%s138 + $0x68] sm:$0xff]
    %v153 = vld [vmem:[%s138 + $0x70] sm:$0xff]
    %v154 = vld [vmem:[%s138 + $0x78] sm:$0xff]
    %v155 = vld [vmem:[#allocation7 + $0x2] sm:$0x1]
    %v156 = vperm.slane %v155, 0
    %157 = vmatpush.msra.mxu0 %v154
    %158 = vmatpush.msra.mxu0 %v153
    %159 = vmatpush.msra.mxu0 %v152
    %160 = vmatpush.msra.mxu0 %v151
    %161 = vmatpush.msra.mxu0 %v150
    %162 = vmatpush.msra.mxu0 %v149
    %163 = vmatpush.msra.mxu0 %v148
    %164 = vmatpush.msra.mxu0 %v147
    %165 = vmatpush.msra.mxu0 %v146
    %166 = vmatpush.msra.mxu0 %v145
    %167 = vmatpush.msra.mxu0 %v144
    %168 = vmatpush.msra.mxu0 %v143
    %169 = vmatpush.msra.mxu0 %v142
    %170 = vmatpush.msra.mxu0 %v141
    %171 = vmatpush.msra.mxu0 %v140
    %172 = vmatpush.msra.mxu0 %v139
    %173 = vmatmul.f32.gmra.mxu0 %v137
    %v174 = vpop.f32.mrf.mxu0
    %v175 = vadd.f32 %v156, %v174
    %176 = vdwg.mxu0
    %v177 = vlaneseq
    %v178 = vand.u32 %v177, 127
    %vm179 = vcmp.lt.s32.totalorder %v178, 4
    %v180 = vsel %vm179, %v175, 0.0
    %vm181 = vcmp.eq.s32.totalorder %v178, 4
    %v182 = vsel %vm181, %v175, 0.0
    %183 = vadd.xlane.f32.xlu0 %v182
    %v184 = vpop.xlane.xlu0 %183
    %185 = vadd.xlane.f32.xlu0 %v180
    %v186 = vpop.xlane.xlu0 %185
    %v187 = vmul.f32 %v186, 0.25
    %v188 = vadd.f32 %v180, %v184
    %v189 = vsub.f32 %v188, %v187
    %190 = vst [vmem:[#allocation8] sm:$0xff] %v189
    // Predicated region
    $region26: #{tpu_custom_call.1} parent=1 // pred_check
      _
    $region27: #{tpu_custom_call.1} parent=1 // pred_check_branch
      %192 = sbr.rel (0) target = $region29
    $region28: #{tpu_custom_call.1} parent=1 // pred_region
      %194 = vsyncadd [#allocation4], 0
      %s196 = sshll.u32 [#allocation8], 4
      %s197 = int_to_ptr.vmem [resolvable:$true] %s196
      %s198 = sshll.u32 %s3, 4
      %s199 = int_to_ptr.hbm [resolvable:$true] %s198
      %201 = dma.vmem_to_hbm [thread:$0]  %s197, 128, %s199, [#allocation4]
    $region29: #{tpu_custom_call.1} parent=1 // pred_fallthru
      _
    // Predicated region
    $region30: #{tpu_custom_call.1} parent=1 // pred_check
      _
    $region31: #{tpu_custom_call.1} parent=1 // pred_check_branch
      %203 = sbr.rel (0) target = $region33
    $region32: #{tpu_custom_call.1} parent=1 // pred_region
      %205 = dma.done [#allocation4], 128
    $region33: #{tpu_custom_call.1} parent=1 // pred_fallthru
      _
    %206 = vsyncpa [#allocation3], 1
    %207 = vsyncpa [#allocation6], 1
    %208 = vsyncpa [#allocation4], 1

</llo_original>
